<compile_context>
chip_gen: v6e
topology: v6e:2x2x1
jax: 0.10.0
libtpu: 0.0.40
codegen_flags: <defaults>
</compile_context>

<pallas_src>
import math

import jax
import jax.numpy as jnp
from jax import lax
from jax.experimental import pallas as pl
from jax.experimental.pallas import tpu as pltpu

_LANE = 128


def _cdiv(a: int, b: int) -> int:
    return -(-a // b)


def _adaptive_windows(in_size: int, out_size: int):
    """PyTorch adaptive_max_pool window boundaries (start, end) per output idx."""
    return [
        ((i * in_size) // out_size, math.ceil((i + 1) * in_size / out_size))
        for i in range(out_size)
    ]


def _sublane_tile(itemsize: int) -> int:
    # Second-minor native tiling: 8 for 4-byte, 16 for 2-byte, 32 for 1-byte dtypes.
    return max(8, 32 // max(int(itemsize), 1))


def _vmem_capacity_bytes() -> int:
    try:
        return int(pltpu.get_tpu_info().vmem_capacity_bytes)
    except Exception:
        return 64 << 20  # v7x per-core VMEM (smallest in the fleet) as fallback


def _choose_tiling(B, H, W, out_rows, dtype, block_batch=None):
    """Pick (batch block bt, in-kernel chunk bc, vmem_limit_bytes)."""
    itemsize = jnp.dtype(dtype).itemsize
    sub = _sublane_tile(itemsize)
    # Padded VMEM footprint of one flattened-batch row (dtype-aware sublane tile).
    in_row = _cdiv(H, sub) * sub * _cdiv(W, _LANE) * _LANE * itemsize
    out_row = _cdiv(out_rows, _LANE) * _LANE * itemsize

    # In-kernel compute chunk: keep live vector values to ~32 f32 vregs so the
    # per-chunk load/reduce codegen never spills and unrolling stays bounded.
    bc = max(1, (128 << 10) // max(in_row, 1))
    if bc >= sub:
        bc = (bc // sub) * sub

    if block_batch is not None:
        bt = int(block_batch)
    else:
        # DMA block: ~8 MiB of input per grid step (amortizes the ~0.35us
        # per-step overhead, ~85-90% of the HBM roofline; the double-buffered
        # pair + temporaries stay well inside v7x's 64 MiB per-core VMEM).
        unit = bc * sub // math.gcd(bc, sub)  # lcm(bc, sub)
        bt = max(unit, ((8 << 20) // max(in_row, 1)) // unit * unit)
        if bt < B:
            # >= 4 grid steps when the batch is big enough: >=2 per TC on
            # v7x's 2-TC megacore, deeper DMA/compute overlap on 1-TC v5e/v6e
            # (blocks stay >= ~2 MiB here since B*in_row > 8 MiB).
            steps = max(4, _cdiv(B, bt))
            bt = min(bt, max(unit, _cdiv(_cdiv(B, steps), unit) * unit))
    bt = max(1, min(bt, B))
    if bt < B and bt % sub != 0:
        # Output block's second-minor dim must be tile-aligned unless it spans
        # the full batch.
        bt = max(sub, (bt // sub) * sub)
    bc = min(bc, bt)

    # VMEM budget: double-buffered in/out blocks + per-chunk temporaries +
    # headroom, capped at 0.8x per-core capacity (v7x: 64 MiB).
    cap = _vmem_capacity_bytes()
    need = 2 * bt * (in_row + out_row) + 4 * bc * in_row + (4 << 20)
    vmem_limit = int(min(max(need, 32 << 20), max(int(cap * 0.8), need)))
    return bt, bc, vmem_limit


def _make_kernel(H, W, height, levels, bt, bc):
    """Pallas kernel specialized for static (H, W, height, levels, bt, bc)."""
    total = int(sum(levels))
    out_rows = height * total
    h_wins = _adaptive_windows(H, height)
    level_w_wins = [_adaptive_windows(W, lvl) for lvl in levels]
    finest = max(levels)
    finest_wins = _adaptive_windows(W, finest)

    def pool_chunk(xc, out_dtype):
        # xc: (rows, H, W) -- H on sublanes, W on lanes, rows on the leading axis.
        rows = xc.shape[0]
        col_ids = lax.broadcasted_iota(jnp.int32, (rows, out_rows), 1)
        out = jnp.zeros((rows, out_rows), dtype=xc.dtype)
        col = 0
        for hs, he in h_wins:
            # Hoisted H (sublane-axis) reduction, shared by every level.
            hx = xc if (hs == 0 and he == H) else xc[:, hs:he, :]
            row_max = jnp.max(hx, axis=1)  # (rows, W)
            # Finest pyramid level computed once from row_max; coarser nesting
            # levels reuse it via cheap elementwise (VPU) maxima.
            fin = [
                jnp.max(row_max[:, ws:we], axis=1, keepdims=True)  # (rows, 1)
                for ws, we in finest_wins
            ]
            for lvl, wins in zip(levels, level_w_wins):
                if lvl == finest:
                    bins = fin
                elif finest % lvl == 0:
                    k = finest // lvl
                    bins = []
                    for i in range(lvl):
                        m = fin[k * i]
                        for j in range(k * i + 1, k * (i + 1)):
                            m = jnp.maximum(m, fin[j])
                        bins.append(m)
                else:
                    bins = [
                        jnp.max(row_max[:, ws:we], axis=1, keepdims=True)
                        for ws, we in wins
                    ]
                for m in bins:
                    # Batched lane-select placement; one slab store per chunk
                    # below instead of height*total masked column stores.
                    out = jnp.where(col_ids == col, m, out)
                    col += 1
        return out.astype(out_dtype)

    n_full = bt // bc
    rem = bt - n_full * bc
    use_fori = (rem == 0) and (n_full > 8)

    def kernel(x_ref, o_ref):
        if use_fori:
            def body(i, carry):
                off = pl.multiple_of(i * bc, bc)
                o_ref[pl.ds(off, bc), :] = pool_chunk(
                    x_ref[pl.ds(off, bc), :, :], o_ref.dtype)
                return carry

            lax.fori_loop(0, n_full, body, 0)
        else:
            chunks = [(ci * bc, bc) for ci in range(n_full)]
            if rem:
                chunks.append((n_full * bc, rem))
            for off, size in chunks:
                o_ref[off:off + size, :] = pool_chunk(
                    x_ref[off:off + size, :, :], o_ref.dtype)

    return kernel


def temporal_pyramid_maxpool_2d(x: jax.Array, levels, height: int = 1,
                                *, block_batch=None) -> jax.Array:
    """Equivalent of TemporalPyramidMaxPool2d.forward.

    Args:
      x: (N, C, H, W) array.
      levels: list of ints (temporal levels).
      height: output height.
      block_batch: optional override of the batch block size (testing/tuning).

    Returns:
      (N, C, height, sum(levels)) array, same dtype as x.
    """
    levels = [int(l) for l in levels]
    height = int(height)
    N, C, H, W = x.shape
    B = N * C
    total = int(sum(levels))
    out_rows = height * total
    itemsize = jnp.dtype(x.dtype).itemsize

    bt, bc, vmem_limit = _choose_tiling(B, H, W, out_rows, x.dtype, block_batch)
    # TODO(synk): for very large single-image footprints (H*W*itemsize >> 8 MiB
    # per channel) add an H-split grid axis with a running-max accumulator
    # instead of shrinking the batch block.

    x_flat = x.reshape(B, H, W)  # free contiguous view: no transpose, no pad

    kernel = _make_kernel(H, W, height, levels, bt, bc)
    cost = pl.CostEstimate(
        flops=B * H * W * height,
        transcendentals=0,
        bytes_accessed=B * H * W * itemsize + B * out_rows * itemsize,
    )

    out = pl.pallas_call(
        kernel,
        out_shape=jax.ShapeDtypeStruct((B, out_rows), x.dtype),
        grid_spec=pltpu.PrefetchScalarGridSpec(
            num_scalar_prefetch=0,
            grid=(_cdiv(B, bt),),
            in_specs=[pl.BlockSpec((bt, H, W), lambda b: (b, 0, 0))],
            out_specs=pl.BlockSpec((bt, out_rows), lambda b: (b, 0)),
        ),
        compiler_params=pltpu.CompilerParams(
            dimension_semantics=("parallel",),
            vmem_limit_bytes=vmem_limit,
        ),
        cost_estimate=cost,
    )(x_flat)
    return out.reshape(N, C, height, total)


def _reference(x: jax.Array, levels, height: int = 1) -> jax.Array:
    """Pure-JAX reference (PyTorch adaptive_max_pool2d semantics)."""
    feats = []
    N, C, H, W = x.shape
    for lvl in levels:
        cols = []
        for hs, he in _adaptive_windows(H, height):
            row = []
            for ws, we in _adaptive_windows(W, lvl):
                row.append(jnp.max(x[:, :, hs:he, ws:we], axis=(2, 3)))
            cols.append(jnp.stack(row, axis=-1))  # (N, C, lvl)
        feats.append(jnp.stack(cols, axis=2))  # (N, C, height, lvl)
    return jnp.concatenate(feats, axis=3)


if __name__ == "__main__":
    # Case 1: primary config matching the module's typical use (single block).
    levels = [1, 2, 4]
    height = 1
    N, C, H, W = 2, 4, 16, 16
    x = jax.random.normal(jax.random.PRNGKey(0), (N, C, H, W), dtype=jnp.float32)
    out = jax.block_until_ready(temporal_pyramid_maxpool_2d(x, levels, height))
    assert out.shape == (N, C, height, sum(levels)), out.shape
    assert jnp.allclose(out, _reference(x, levels, height)), "mismatch (case 1)"

    # Case 2: odd sizes, height > 1, non-nesting levels branch.
    levels2, height2 = [2, 3], 2
    x2 = jax.random.normal(jax.random.PRNGKey(1), (3, 5, 9, 13), dtype=jnp.float32)
    out2 = jax.block_until_ready(temporal_pyramid_maxpool_2d(x2, levels2, height2))
    assert out2.shape == (3, 5, height2, sum(levels2)), out2.shape
    assert jnp.allclose(out2, _reference(x2, levels2, height2)), "mismatch (case 2)"

    # Case 3: batch large enough that the default chooser emits a multi-step
    # grid (>=4 parallel blocks) and the in-kernel fori_loop chunking path.
    x3 = jax.random.normal(jax.random.PRNGKey(2), (8, 144, 16, 24), dtype=jnp.float32)
    out3 = jax.block_until_ready(temporal_pyramid_maxpool_2d(x3, levels, height))
    assert out3.shape == (8, 144, height, sum(levels)), out3.shape
    assert jnp.allclose(out3, _reference(x3, levels, height)), "mismatch (case 3)"

    # Case 4: forced small batch block -> ragged last grid block (no pad, no
    # trailing slice needed; out-of-range rows are dropped by the pipeline).
    x4 = jax.random.normal(jax.random.PRNGKey(3), (3, 40, 16, 24), dtype=jnp.float32)
    out4 = jax.block_until_ready(
        temporal_pyramid_maxpool_2d(x4, levels, height, block_batch=48))
    assert out4.shape == (3, 40, height, sum(levels)), out4.shape
    assert jnp.allclose(out4, _reference(x4, levels, height)), "mismatch (case 4)"

    print("KERNEL_OK")
</pallas_src>

<mosaic_0001>
module attributes {stable_mosaic.version = 11 : i64} {
  func.func @kernel(%arg0: i32, %arg1: memref<8x16x16xf32, #tpu.memory_space<vmem>>, %arg2: memref<8x7xf32, #tpu.memory_space<vmem>>) attributes {dimension_semantics = [#tpu.dimension_semantics<parallel>], iteration_bounds = array<i64: 1>, scalar_prefetch = 0 : i64, scratch_operands = 0 : i64, tpu.core_type = #tpu.core_type<tc>, window_params = [{transform_indices = @transform_0, window_bounds = array<i64: 8, 16, 16>}, {transform_indices = @transform_1, window_bounds = array<i64: 8, 7>}]} {
    %c0 = arith.constant 0 : index
    %c0_0 = arith.constant 0 : index
    %c0_1 = arith.constant 0 : index
    %0 = vector.load %arg1[%c0, %c0_0, %c0_1] : memref<8x16x16xf32, #tpu.memory_space<vmem>>, vector<8x16x16xf32>
    %1 = tpu.iota {dimensions = array<i32: 1>} : vector<8x7xi32>
    %cst = arith.constant 0.000000e+00 : f32
    %2 = vector.broadcast %cst : f32 to vector<8x7xf32>
    %cst_2 = arith.constant dense<0xFF800000> : vector<8x16xf32>
    %3 = vector.multi_reduction <maximumf>, %0, %cst_2 [1] : vector<8x16x16xf32> to vector<8x16xf32>
    %4 = vector.extract_strided_slice %3 {offsets = [0, 0], sizes = [8, 4], strides = [1, 1]} : vector<8x16xf32> to vector<8x4xf32>
    %cst_3 = arith.constant dense<0xFF800000> : vector<8xf32>
    %5 = vector.multi_reduction <maximumf>, %4, %cst_3 [1] : vector<8x4xf32> to vector<8xf32>
    %6 = vector.shape_cast %5 : vector<8xf32> to vector<8x1xf32>
    %7 = vector.extract_strided_slice %3 {offsets = [0, 4], sizes = [8, 4], strides = [1, 1]} : vector<8x16xf32> to vector<8x4xf32>
    %cst_4 = arith.constant dense<0xFF800000> : vector<8xf32>
    %8 = vector.multi_reduction <maximumf>, %7, %cst_4 [1] : vector<8x4xf32> to vector<8xf32>
    %9 = vector.shape_cast %8 : vector<8xf32> to vector<8x1xf32>
    %10 = vector.extract_strided_slice %3 {offsets = [0, 8], sizes = [8, 4], strides = [1, 1]} : vector<8x16xf32> to vector<8x4xf32>
    %cst_5 = arith.constant dense<0xFF800000> : vector<8xf32>
    %11 = vector.multi_reduction <maximumf>, %10, %cst_5 [1] : vector<8x4xf32> to vector<8xf32>
    %12 = vector.shape_cast %11 : vector<8xf32> to vector<8x1xf32>
    %13 = vector.extract_strided_slice %3 {offsets = [0, 12], sizes = [8, 4], strides = [1, 1]} : vector<8x16xf32> to vector<8x4xf32>
    %cst_6 = arith.constant dense<0xFF800000> : vector<8xf32>
    %14 = vector.multi_reduction <maximumf>, %13, %cst_6 [1] : vector<8x4xf32> to vector<8xf32>
    %15 = vector.shape_cast %14 : vector<8xf32> to vector<8x1xf32>
    %16 = arith.maximumf %6, %9 : vector<8x1xf32>
    %17 = arith.maximumf %16, %12 : vector<8x1xf32>
    %18 = arith.maximumf %17, %15 : vector<8x1xf32>
    %c0_i32 = arith.constant 0 : i32
    %19 = vector.broadcast %c0_i32 : i32 to vector<8x7xi32>
    %20 = arith.cmpi eq, %1, %19 : vector<8x7xi32>
    %21 = vector.shape_cast %18 : vector<8x1xf32> to vector<8x1xf32>
    %22 = vector.broadcast %21 : vector<8x1xf32> to vector<8x7xf32>
    %23 = arith.select %20, %22, %2 : vector<8x7xi1>, vector<8x7xf32>
    %24 = arith.maximumf %6, %9 : vector<8x1xf32>
    %25 = arith.maximumf %12, %15 : vector<8x1xf32>
    %c1_i32 = arith.constant 1 : i32
    %26 = vector.broadcast %c1_i32 : i32 to vector<8x7xi32>
    %27 = arith.cmpi eq, %1, %26 : vector<8x7xi32>
    %28 = vector.shape_cast %24 : vector<8x1xf32> to vector<8x1xf32>
    %29 = vector.broadcast %28 : vector<8x1xf32> to vector<8x7xf32>
    %30 = arith.select %27, %29, %23 : vector<8x7xi1>, vector<8x7xf32>
    %c2_i32 = arith.constant 2 : i32
    %31 = vector.broadcast %c2_i32 : i32 to vector<8x7xi32>
    %32 = arith.cmpi eq, %1, %31 : vector<8x7xi32>
    %33 = vector.shape_cast %25 : vector<8x1xf32> to vector<8x1xf32>
    %34 = vector.broadcast %33 : vector<8x1xf32> to vector<8x7xf32>
    %35 = arith.select %32, %34, %30 : vector<8x7xi1>, vector<8x7xf32>
    %c3_i32 = arith.constant 3 : i32
    %36 = vector.broadcast %c3_i32 : i32 to vector<8x7xi32>
    %37 = arith.cmpi eq, %1, %36 : vector<8x7xi32>
    %38 = vector.shape_cast %6 : vector<8x1xf32> to vector<8x1xf32>
    %39 = vector.broadcast %38 : vector<8x1xf32> to vector<8x7xf32>
    %40 = arith.select %37, %39, %35 : vector<8x7xi1>, vector<8x7xf32>
    %c4_i32 = arith.constant 4 : i32
    %41 = vector.broadcast %c4_i32 : i32 to vector<8x7xi32>
    %42 = arith.cmpi eq, %1, %41 : vector<8x7xi32>
    %43 = vector.shape_cast %9 : vector<8x1xf32> to vector<8x1xf32>
    %44 = vector.broadcast %43 : vector<8x1xf32> to vector<8x7xf32>
    %45 = arith.select %42, %44, %40 : vector<8x7xi1>, vector<8x7xf32>
    %c5_i32 = arith.constant 5 : i32
    %46 = vector.broadcast %c5_i32 : i32 to vector<8x7xi32>
    %47 = arith.cmpi eq, %1, %46 : vector<8x7xi32>
    %48 = vector.shape_cast %12 : vector<8x1xf32> to vector<8x1xf32>
    %49 = vector.broadcast %48 : vector<8x1xf32> to vector<8x7xf32>
    %50 = arith.select %47, %49, %45 : vector<8x7xi1>, vector<8x7xf32>
    %c6_i32 = arith.constant 6 : i32
    %51 = vector.broadcast %c6_i32 : i32 to vector<8x7xi32>
    %52 = arith.cmpi eq, %1, %51 : vector<8x7xi32>
    %53 = vector.shape_cast %15 : vector<8x1xf32> to vector<8x1xf32>
    %54 = vector.broadcast %53 : vector<8x1xf32> to vector<8x7xf32>
    %55 = arith.select %52, %54, %50 : vector<8x7xi1>, vector<8x7xf32>
    %c0_7 = arith.constant 0 : index
    %c0_8 = arith.constant 0 : index
    %56 = vector.load %arg2[%c0_7, %c0_8] : memref<8x7xf32, #tpu.memory_space<vmem>>, vector<8x7xf32>
    tpu.vector_store %arg2[%c0_7, %c0_8], %55 {strides = array<i32>} : memref<8x7xf32, #tpu.memory_space<vmem>>, vector<8x7xf32>,
    return
  }
  func.func @transform_0(%arg0: i32) -> (i32, i32, i32) {
    %c0_i32 = arith.constant 0 : i32
    %c0_i32_0 = arith.constant 0 : i32
    %c0_i32_1 = arith.constant 0 : i32
    return %arg0, %c0_i32, %c0_i32_0 : i32, i32, i32
  }
  func.func @transform_1(%arg0: i32) -> (i32, i32) {
    %c0_i32 = arith.constant 0 : i32
    %c0_i32_0 = arith.constant 0 : i32
    return %arg0, %c0_i32 : i32, i32
  }
}

</mosaic_0001>

<llo_original>
// kernel: tpu_custom_call.1
$region0: #{tpu_custom_call.1}
  #allocation0 [shape = 'u32[]', space=smem, size = 0x4, offset = 0x4, fixed_abs, tag = 'smem constant byte address 0x4 - core index']
  #allocation1 [shape = 'u32[144,128]{1,0:T(1,128)}', space=vmem, size = 0x12000, scoped, tag = 'internal scratch']
  %s0 = inlined_call_operand.hbm [shape: f32[8,16,16], index: 0, kind: input, shape index: {}]
  %s1 = inlined_call_operand.hbm [shape: f32[8,7], index: 1, kind: output, shape index: {}]
  %s2 = sld [smem:[#allocation0]]
  $region18: #{tpu_custom_call.1} parent=0
    _
  %s4 = ssub.s32 1, %s2
  %s5 = scalar_select 0, %s4, %s2
  $region1: #{tpu_custom_call.1} parent=0
    #allocation2 [shape = 'u8[65536]{0}', space=vmem, size = 0x10000, scoped, tag = 'input window, operand 0, single buffered']
    #allocation3 [shape = 's32[1]{0}', space=sflag, size = 0x4, scoped, tag = 'scoped memory for tpu_custom_call.1']
    #allocation4 [shape = 's32[1]{0}', space=sflag, size = 0x4, scoped, tag = 'scoped memory for tpu_custom_call.1']
    #allocation5 [shape = 'u8[4096]{0}', space=vmem, size = 0x1000, scoped, tag = 'output window, operand 0, single buffered']
    %6 = vsyncpa [#allocation3], 0
    %7 = vsyncpa [#allocation4], 0
    // Predicated region
    $region2: #{tpu_custom_call.1} parent=1 // pred_check
      _
    $region3: #{tpu_custom_call.1} parent=1 // pred_check_branch
      %9 = sbr.rel (0) target = $region5
    $region4: #{tpu_custom_call.1} parent=1 // pred_region
      %s11 = ssub.s32 2048, 2048
      %12 = vsyncadd [#allocation3], %s11
      %s13 = sshll.u32 [#allocation2], 4
      %s14 = int_to_ptr.vmem [resolvable:$true] %s13
      %19 = dma.hbm_to_vmem [thread:$0]  %s0, 2048, %s14, [#allocation3], 128, 128, 8
    $region5: #{tpu_custom_call.1} parent=1 // pred_fallthru
      _
    // Predicated region
    $region6: #{tpu_custom_call.1} parent=1 // pred_check
      _
    $region7: #{tpu_custom_call.1} parent=1 // pred_check_branch
      %21 = sbr.rel (0) target = $region9
    $region8: #{tpu_custom_call.1} parent=1 // pred_region
      %22 = dma.done [#allocation3], 2048
    $region9: #{tpu_custom_call.1} parent=1 // pred_fallthru
      _
    %v23 = vld [vmem:[#allocation2] sm:$0xff]
    %v24 = vld [vmem:[#allocation2 + $0x8] sm:$0xff]
    %v25 = vld [vmem:[#allocation2 + $0x10] sm:$0xff]
    %v26 = vld [vmem:[#allocation2 + $0x18] sm:$0xff]
    %v27 = vld [vmem:[#allocation2 + $0x20] sm:$0xff]
    %v28 = vld [vmem:[#allocation2 + $0x28] sm:$0xff]
    %v29 = vld [vmem:[#allocation2 + $0x30] sm:$0xff]
    %v30 = vld [vmem:[#allocation2 + $0x38] sm:$0xff]
    %v31 = vld [vmem:[#allocation2 + $0x40] sm:$0xff]
    %v32 = vld [vmem:[#allocation2 + $0x48] sm:$0xff]
    %v33 = vld [vmem:[#allocation2 + $0x50] sm:$0xff]
    %v34 = vld [vmem:[#allocation2 + $0x58] sm:$0xff]
    %v35 = vld [vmem:[#allocation2 + $0x60] sm:$0xff]
    %v36 = vld [vmem:[#allocation2 + $0x68] sm:$0xff]
    %v37 = vld [vmem:[#allocation2 + $0x70] sm:$0xff]
    %v38 = vld [vmem:[#allocation2 + $0x78] sm:$0xff]
    %v39 = vlaneseq
    %v40 = vand.u32 %v39, 127
    %vm41 = vcmask 130048
    %v42 = vsel %vm41, %v23, -inf
    %v43 = vsel %vm41, %v24, -inf
    %v44 = vmax.f32 %v42, %v43
    %v45 = vrot.slane %v44, 4
    %v46 = vmax.f32 %v44, %v45
    %v47 = vrot.slane %v46, 2
    %v48 = vmax.f32 %v46, %v47
    %v49 = vrot.slane %v48, 1
    %v50 = vmax.f32 %v48, %v49
    %v51 = vsel %vm41, %v25, -inf
    %v52 = vsel %vm41, %v26, -inf
    %v53 = vmax.f32 %v51, %v52
    %v54 = vrot.slane %v53, 4
    %v55 = vmax.f32 %v53, %v54
    %v56 = vrot.slane %v55, 2
    %v57 = vmax.f32 %v55, %v56
    %v58 = vrot.slane %v57, 1
    %v59 = vmax.f32 %v57, %v58
    %v60 = vsel %vm41, %v27, -inf
    %v61 = vsel %vm41, %v28, -inf
    %v62 = vmax.f32 %v60, %v61
    %v63 = vrot.slane %v62, 4
    %v64 = vmax.f32 %v62, %v63
    %v65 = vrot.slane %v64, 2
    %v66 = vmax.f32 %v64, %v65
    %v67 = vrot.slane %v66, 1
    %v68 = vmax.f32 %v66, %v67
    %v69 = vsel %vm41, %v29, -inf
    %v70 = vsel %vm41, %v30, -inf
    %v71 = vmax.f32 %v69, %v70
    %v72 = vrot.slane %v71, 4
    %v73 = vmax.f32 %v71, %v72
    %v74 = vrot.slane %v73, 2
    %v75 = vmax.f32 %v73, %v74
    %v76 = vrot.slane %v75, 1
    %v77 = vmax.f32 %v75, %v76
    %v78 = vsel %vm41, %v31, -inf
    %v79 = vsel %vm41, %v32, -inf
    %v80 = vmax.f32 %v78, %v79
    %v81 = vrot.slane %v80, 4
    %v82 = vmax.f32 %v80, %v81
    %v83 = vrot.slane %v82, 2
    %v84 = vmax.f32 %v82, %v83
    %v85 = vrot.slane %v84, 1
    %v86 = vmax.f32 %v84, %v85
    %v87 = vsel %vm41, %v33, -inf
    %v88 = vsel %vm41, %v34, -inf
    %v89 = vmax.f32 %v87, %v88
    %v90 = vrot.slane %v89, 4
    %v91 = vmax.f32 %v89, %v90
    %v92 = vrot.slane %v91, 2
    %v93 = vmax.f32 %v91, %v92
    %v94 = vrot.slane %v93, 1
    %v95 = vmax.f32 %v93, %v94
    %v96 = vsel %vm41, %v35, -inf
    %v97 = vsel %vm41, %v36, -inf
    %v98 = vmax.f32 %v96, %v97
    %v99 = vrot.slane %v98, 4
    %v100 = vmax.f32 %v98, %v99
    %v101 = vrot.slane %v100, 2
    %v102 = vmax.f32 %v100, %v101
    %v103 = vrot.slane %v102, 1
    %v104 = vmax.f32 %v102, %v103
    %v105 = vsel %vm41, %v37, -inf
    %v106 = vsel %vm41, %v38, -inf
    %v107 = vmax.f32 %v105, %v106
    %v108 = vrot.slane %v107, 4
    %v109 = vmax.f32 %v107, %v108
    %v110 = vrot.slane %v109, 2
    %v111 = vmax.f32 %v109, %v110
    %v112 = vrot.slane %v111, 1
    %v113 = vmax.f32 %v111, %v112
    %vm122 = vcmask 1041409
    %v123 = vsel %vm122, %v59, %v50
    %vm124 = vcmask 1042434
    %v125 = vsel %vm124, %v68, %v123
    %vm126 = vcmask 1043459
    %v127 = vsel %vm126, %v77, %v125
    %vm128 = vcmask 1044484
    %v129 = vsel %vm128, %v86, %v127
    %vm130 = vcmask 1045509
    %v131 = vsel %vm130, %v95, %v129
    %vm132 = vcmask 1046534
    %v133 = vsel %vm132, %v104, %v131
    %vm134 = vcmask 1047559
    %v135 = vsel %vm134, %v113, %v133
    %vm137 = vcmask 31744
    %v138 = vsel %vm137, %v135, -inf
    %139 = vmax.xlane.f32.xlu0 %v138
    %v140 = vpop.xlane.xlu0 %139
    %vm141 = vcmask 64544
    %v142 = vsel %vm141, %v135, -inf
    %143 = vmax.xlane.f32.xlu0 %v142
    %v144 = vpop.xlane.xlu0 %143
    %vm145 = vcmask 97344
    %v146 = vsel %vm145, %v135, -inf
    %147 = vmax.xlane.f32.xlu0 %v146
    %v148 = vpop.xlane.xlu0 %147
    %vm149 = vcmask 130144
    %v150 = vsel %vm149, %v135, -inf
    %151 = vmax.xlane.f32.xlu0 %v150
    %v152 = vpop.xlane.xlu0 %151
    %v153 = vmax.f32 %v140, %v144
    %v154 = vmax.f32 %v153, %v148
    %v155 = vmax.f32 %v154, %v152
    %vm156 = vcmp.eq.s32.totalorder %v40, 0
    %v157 = vsel %vm156, %v155, 0.0
    %v158 = vmax.f32 %v148, %v152
    %vm159 = vcmp.eq.s32.totalorder %v40, 1
    %v160 = vsel %vm159, %v153, %v157
    %vm161 = vcmp.eq.s32.totalorder %v40, 2
    %v162 = vsel %vm161, %v158, %v160
    %vm163 = vcmp.eq.s32.totalorder %v40, 3
    %v164 = vsel %vm163, %v140, %v162
    %vm165 = vcmp.eq.s32.totalorder %v40, 4
    %v166 = vsel %vm165, %v144, %v164
    %vm167 = vcmp.eq.s32.totalorder %v40, 5
    %v168 = vsel %vm167, %v148, %v166
    %vm169 = vcmp.eq.s32.totalorder %v40, 6
    %v170 = vsel %vm169, %v152, %v168
    %vm171 = vcmask 56320
    %172 = vst.msk [vmem:[#allocation5] sm:$0xff] %vm171, %v170
    // Predicated region
    $region10: #{tpu_custom_call.1} parent=1 // pred_check
      _
    $region11: #{tpu_custom_call.1} parent=1 // pred_check_branch
      %174 = sbr.rel (0) target = $region13
    $region12: #{tpu_custom_call.1} parent=1 // pred_region
      %s176 = ssub.s32 128, 128
      %177 = vsyncadd [#allocation4], %s176
      %s179 = sshll.u32 [#allocation5], 4
      %s180 = int_to_ptr.vmem [resolvable:$true] %s179
      %182 = dma.vmem_to_hbm [thread:$0]  %s180, 128, %s1, [#allocation4]
    $region13: #{tpu_custom_call.1} parent=1 // pred_fallthru
      _
    // Predicated region
    $region14: #{tpu_custom_call.1} parent=1 // pred_check
      _
    $region15: #{tpu_custom_call.1} parent=1 // pred_check_branch
      %184 = sbr.rel (0) target = $region17
    $region16: #{tpu_custom_call.1} parent=1 // pred_region
      %185 = dma.done [#allocation4], 128
    $region17: #{tpu_custom_call.1} parent=1 // pred_fallthru
      _
    %186 = vsyncpa [#allocation3], 1
    %187 = vsyncpa [#allocation4], 1

</llo_original>
